<compile_context>
chip_gen: v7x
topology: tpu7x:2x2x1
jax: 0.10.0
libtpu: 0.0.40
codegen_flags: <defaults>
</compile_context>

<pallas_src>
import jax
import jax.numpy as jnp
from jax.experimental import pallas as pl
from jax.experimental.pallas import tpu as pltpu


def dsrrnn_kernel(x_ref, h_ref, w_cat_ref, b_pack_ref, w_proj_ref,
                  out_ref, h_out_ref):
    In = x_ref.shape[1]
    H = h_ref.shape[1]
    Out = out_ref.shape[1]

    # Packed biases: row 0 = b_ih + b_hh (first H lanes), row 1 = b_proj
    # (first Out lanes).  Prefix slices only — no unaligned lane shuffles.
    b = b_pack_ref[...]                       # (2, max(H, Out))
    b_cell = b[0:1, :H]                       # (1, H)
    b_proj = b[1:2, :Out]                     # (1, Out)

    # Single-step Elman RNN cell (tanh).  Two small MXU matmuls against
    # sublane-aligned slices of the resident concatenated weight matrix:
    #   x @ W_ih^T + h @ W_hh^T + (b_ih + b_hh)
    pre = (jnp.dot(x_ref[...], w_cat_ref[:In, :],
                   preferred_element_type=jnp.float32)
           + jnp.dot(h_ref[...], w_cat_ref[In:, :],
                     preferred_element_type=jnp.float32)
           + b_cell)
    h_new = jnp.tanh(pre)                     # (B, H)

    # Projection layer: hidden -> output_size
    logits = (jnp.dot(h_new, w_proj_ref[...],
                      preferred_element_type=jnp.float32)
              + b_proj)                       # (B, Out)

    # Softmax over dim=1 (feature axis); exact reciprocal — the single (B,1)
    # divide is off the critical path and approx=True risks the 1e-5 tolerance.
    m = jnp.max(logits, axis=1, keepdims=True)
    e = jnp.exp(logits - m)
    probs = e * pl.reciprocal(jnp.sum(e, axis=1, keepdims=True), approx=False)

    out_ref[...] = probs.astype(out_ref.dtype)
    h_out_ref[...] = h_new.astype(h_out_ref.dtype)


def dsrrnn_prepare_params(w_ih, b_ih, w_hh, b_hh, w_proj, b_proj):
    """One-time packing of weights (PyTorch (out,in) convention) for the kernel.

    Returns (w_cat, b_pack, w_proj_t):
      w_cat    : (In + H, H)        = [W_ih^T ; W_hh^T]
      b_pack   : (2, max(H, Out))   row 0 = b_ih + b_hh, row 1 = b_proj (zero-padded)
      w_proj_t : (H, Out)           = W_proj^T
    """
    H, In = w_ih.shape
    Out = w_proj.shape[0]
    W = max(H, Out)

    w_cat = jnp.concatenate([w_ih.T, w_hh.T], axis=0).astype(jnp.float32)
    b_pack = jnp.zeros((2, W), jnp.float32)
    b_pack = b_pack.at[0, :H].set((b_ih + b_hh).astype(jnp.float32))
    b_pack = b_pack.at[1, :Out].set(b_proj.astype(jnp.float32))
    w_proj_t = w_proj.T.astype(jnp.float32)
    return w_cat, b_pack, w_proj_t


@jax.jit
def dsrrnn_forward(x, h, w_cat, b_pack, w_proj_t):
    """One DSRRNN step.  x: (B, In) f32; h: (B, H) f32; packed params from
    dsrrnn_prepare_params().  Whole problem is a single block (grid=(1,));
    the hidden state is aliased (h -> h_out) so callers that donate h carry
    it in place across the rollout."""
    B, In = x.shape
    H = h.shape[1]
    Out = w_proj_t.shape[1]

    whole = lambda shape: pl.BlockSpec(shape, lambda i: (0, 0))

    out, h_out = pl.pallas_call(
        dsrrnn_kernel,
        out_shape=(jax.ShapeDtypeStruct((B, Out), jnp.float32),
                   jax.ShapeDtypeStruct((B, H), jnp.float32)),
        grid_spec=pltpu.PrefetchScalarGridSpec(
            num_scalar_prefetch=0,
            grid=(1,),
            in_specs=[
                whole((B, In)),          # x
                whole((B, H)),           # h          (aliased to h_out)
                whole((In + H, H)),      # [W_ih^T; W_hh^T]
                whole(b_pack.shape),     # packed biases
                whole((H, Out)),         # W_proj^T
            ],
            out_specs=[
                whole((B, Out)),         # softmax output
                whole((B, H)),           # new hidden
            ],
        ),
        input_output_aliases={1: 1},     # h (input 1) aliases h_out (output 1)
        # Trivial grid: keep it on one TensorCore (don't shard across v7x TCs).
        compiler_params=pltpu.CompilerParams(
            dimension_semantics=("arbitrary",)),
    )(x, h, w_cat, b_pack, w_proj_t)
    return out, h_out


def dsrrnn_reference(x, h, w_ih, b_ih, w_hh, b_hh, w_proj, b_proj):
    h_new = jnp.tanh(x @ w_ih.T + b_ih + h @ w_hh.T + b_hh)
    logits = h_new @ w_proj.T + b_proj
    probs = jax.nn.softmax(logits, axis=1)
    return probs, h_new


if __name__ == "__main__":
    # Module hyperparameters (small, consistent with the forward pass):
    #   len(operators) = 16 -> input_size = 32, output_size = 16
    #   hidden_size = 32, num_layers = 1 (required by the PyTorch forward)
    num_operators = 16
    input_size = 2 * num_operators   # 32
    hidden_size = 32
    output_size = num_operators      # 16
    num_layers = 1
    batch = 16

    key = jax.random.PRNGKey(0)
    ks = jax.random.split(key, 9)

    # Deterministic "torch.rand"-style parameter init (uniform [0,1) where torch
    # uses rand; uniform [-k, k) for nn.RNN / nn.Linear-style weights).
    init_input = jax.random.uniform(ks[0], (1, input_size), jnp.float32)
    init_hidden = jax.random.uniform(ks[1], (num_layers, hidden_size), jnp.float32)

    k_rnn = 1.0 / jnp.sqrt(hidden_size)
    w_ih = jax.random.uniform(ks[2], (hidden_size, input_size), jnp.float32, -k_rnn, k_rnn)
    w_hh = jax.random.uniform(ks[3], (hidden_size, hidden_size), jnp.float32, -k_rnn, k_rnn)
    b_ih = jax.random.uniform(ks[4], (hidden_size,), jnp.float32, -k_rnn, k_rnn)
    b_hh = jax.random.uniform(ks[5], (hidden_size,), jnp.float32, -k_rnn, k_rnn)
    w_proj = jax.random.uniform(ks[6], (output_size, hidden_size), jnp.float32, -k_rnn, k_rnn)
    b_proj = jax.random.uniform(ks[7], (output_size,), jnp.float32, -k_rnn, k_rnn)

    # Inputs exactly as sample_sequence builds them for the first step:
    #   input_tensor = init_input.repeat(n, 1); hidden_tensor = init_hidden.repeat(n, 1)
    x = jnp.tile(init_input, (batch, 1))                    # (B, input_size)
    h = jnp.tile(init_hidden, (batch, 1))                   # (B, hidden_size), num_layers=1

    # One-time weight packing (amortized across the whole rollout).
    w_cat, b_pack, w_proj_t = dsrrnn_prepare_params(w_ih, b_ih, w_hh, b_hh,
                                                    w_proj, b_proj)

    out, h_new = dsrrnn_forward(x, h, w_cat, b_pack, w_proj_t)
    jax.block_until_ready((out, h_new))

    ref_out, ref_h = dsrrnn_reference(x, h, w_ih, b_ih, w_hh, b_hh, w_proj, b_proj)
    assert jnp.allclose(out, ref_out, atol=1e-5, rtol=1e-5)
    assert jnp.allclose(h_new, ref_h, atol=1e-5, rtol=1e-5)
    assert jnp.allclose(jnp.sum(out, axis=1), 1.0, atol=1e-5)

    # TODO(synk): sample_sequence / apply_constraints / get_parent_sibling /
    # get_next_input are data-dependent Python control flow with categorical
    # sampling between timesteps.  The biggest remaining win would be fusing
    # the whole rollout into a single pallas_call with grid=(T,) ("arbitrary"),
    # weights resident in VMEM, hidden state in VMEM scratch, and on-device
    # Gumbel-max sampling via pltpu.prng_seed/prng_random_bits — but that also
    # requires porting the constraint-mask logic in-kernel, so only the
    # per-step forward is implemented here.
    print("KERNEL_OK")
</pallas_src>

<mosaic_0001>
module attributes {stable_mosaic.version = 11 : i64} {
  func.func @dsrrnn_kernel(%arg0: i32, %arg1: memref<16x32xf32, #tpu.memory_space<vmem>>, %arg2: memref<16x32xf32, #tpu.memory_space<vmem>>, %arg3: memref<64x32xf32, #tpu.memory_space<vmem>>, %arg4: memref<2x32xf32, #tpu.memory_space<vmem>>, %arg5: memref<32x16xf32, #tpu.memory_space<vmem>>, %arg6: memref<16x16xf32, #tpu.memory_space<vmem>>, %arg7: memref<16x32xf32, #tpu.memory_space<vmem>>) attributes {dimension_semantics = [#tpu.dimension_semantics<arbitrary>], iteration_bounds = array<i64: 1>, scalar_prefetch = 0 : i64, scratch_operands = 0 : i64, tpu.core_type = #tpu.core_type<tc>, window_params = [{pipeline_mode = #tpu.pipeline_mode<synchronous>, transform_indices = @transform_0, window_bounds = array<i64: 16, 32>}, {pipeline_mode = #tpu.pipeline_mode<synchronous>, transform_indices = @transform_1, window_bounds = array<i64: 16, 32>}, {pipeline_mode = #tpu.pipeline_mode<synchronous>, transform_indices = @transform_2, window_bounds = array<i64: 64, 32>}, {pipeline_mode = #tpu.pipeline_mode<synchronous>, transform_indices = @transform_3, window_bounds = array<i64: 2, 32>}, {pipeline_mode = #tpu.pipeline_mode<synchronous>, transform_indices = @transform_4, window_bounds = array<i64: 32, 16>}, {pipeline_mode = #tpu.pipeline_mode<synchronous>, transform_indices = @transform_5, window_bounds = array<i64: 16, 16>}, {pipeline_mode = #tpu.pipeline_mode<synchronous>, transform_indices = @transform_6, window_bounds = array<i64: 16, 32>}]} {
    %c0 = arith.constant 0 : index
    %c0_0 = arith.constant 0 : index
    %0 = vector.load %arg4[%c0, %c0_0] : memref<2x32xf32, #tpu.memory_space<vmem>>, vector<2x32xf32>
    %1 = vector.extract_strided_slice %0 {offsets = [0, 0], sizes = [1, 32], strides = [1, 1]} : vector<2x32xf32> to vector<1x32xf32>
    %2 = vector.extract_strided_slice %0 {offsets = [1, 0], sizes = [1, 16], strides = [1, 1]} : vector<2x32xf32> to vector<1x16xf32>
    %c0_1 = arith.constant 0 : index
    %c0_2 = arith.constant 0 : index
    %3 = vector.load %arg1[%c0_1, %c0_2] : memref<16x32xf32, #tpu.memory_space<vmem>>, vector<16x32xf32>
    %c0_3 = arith.constant 0 : index
    %c0_4 = arith.constant 0 : index
    %4 = vector.load %arg3[%c0_3, %c0_4] : memref<64x32xf32, #tpu.memory_space<vmem>>, vector<32x32xf32>
    %cst = arith.constant dense<0.000000e+00> : vector<16x32xf32>
    %5 = tpu.matmul %3, %4, %cst {dimension_numbers = #tpu.dot_dimension_numbers<[1], [0], [0], [1], [0, 0, 1, 1], [], []>} : vector<16x32xf32>, vector<32x32xf32>, vector<16x32xf32> -> vector<16x32xf32>
    %c0_5 = arith.constant 0 : index
    %c0_6 = arith.constant 0 : index
    %6 = vector.load %arg2[%c0_5, %c0_6] : memref<16x32xf32, #tpu.memory_space<vmem>>, vector<16x32xf32>
    %c32 = arith.constant 32 : index
    %c0_7 = arith.constant 0 : index
    %7 = vector.load %arg3[%c32, %c0_7] : memref<64x32xf32, #tpu.memory_space<vmem>>, vector<32x32xf32>
    %cst_8 = arith.constant dense<0.000000e+00> : vector<16x32xf32>
    %8 = tpu.matmul %6, %7, %cst_8 {dimension_numbers = #tpu.dot_dimension_numbers<[1], [0], [0], [1], [0, 0, 1, 1], [], []>} : vector<16x32xf32>, vector<32x32xf32>, vector<16x32xf32> -> vector<16x32xf32>
    %9 = arith.addf %5, %8 : vector<16x32xf32>
    %10 = vector.broadcast %1 : vector<1x32xf32> to vector<16x32xf32>
    %11 = arith.addf %9, %10 : vector<16x32xf32>
    %12 = math.tanh %11 : vector<16x32xf32>
    %c0_9 = arith.constant 0 : index
    %c0_10 = arith.constant 0 : index
    %13 = vector.load %arg5[%c0_9, %c0_10] : memref<32x16xf32, #tpu.memory_space<vmem>>, vector<32x16xf32>
    %cst_11 = arith.constant dense<0.000000e+00> : vector<16x16xf32>
    %14 = tpu.matmul %12, %13, %cst_11 {dimension_numbers = #tpu.dot_dimension_numbers<[1], [0], [0], [1], [0, 0, 1, 1], [], []>} : vector<16x32xf32>, vector<32x16xf32>, vector<16x16xf32> -> vector<16x16xf32>
    %15 = vector.broadcast %2 : vector<1x16xf32> to vector<16x16xf32>
    %16 = arith.addf %14, %15 : vector<16x16xf32>
    %cst_12 = arith.constant dense<0xFF800000> : vector<16xf32>
    %17 = vector.multi_reduction <maximumf>, %16, %cst_12 [1] : vector<16x16xf32> to vector<16xf32>
    %18 = vector.shape_cast %17 : vector<16xf32> to vector<16x1xf32>
    %19 = vector.broadcast %18 : vector<16x1xf32> to vector<16x16xf32>
    %20 = arith.subf %16, %19 : vector<16x16xf32>
    %21 = math.exp %20 : vector<16x16xf32>
    %cst_13 = arith.constant dense<0.000000e+00> : vector<16xf32>
    %22 = vector.multi_reduction <add>, %21, %cst_13 [1] : vector<16x16xf32> to vector<16xf32>
    %23 = vector.shape_cast %22 : vector<16xf32> to vector<16x1xf32>
    %24 = tpu.reciprocal %23 : vector<16x1xf32> -> vector<16x1xf32>
    %25 = vector.broadcast %24 : vector<16x1xf32> to vector<16x16xf32>
    %26 = arith.mulf %21, %25 : vector<16x16xf32>
    %c0_14 = arith.constant 0 : index
    %c0_15 = arith.constant 0 : index
    %27 = vector.load %arg6[%c0_14, %c0_15] : memref<16x16xf32, #tpu.memory_space<vmem>>, vector<16x16xf32>
    tpu.vector_store %arg6[%c0_14, %c0_15], %26 {strides = array<i32>} : memref<16x16xf32, #tpu.memory_space<vmem>>, vector<16x16xf32>,
    %c0_16 = arith.constant 0 : index
    %c0_17 = arith.constant 0 : index
    %28 = vector.load %arg7[%c0_16, %c0_17] : memref<16x32xf32, #tpu.memory_space<vmem>>, vector<16x32xf32>
    tpu.vector_store %arg7[%c0_16, %c0_17], %12 {strides = array<i32>} : memref<16x32xf32, #tpu.memory_space<vmem>>, vector<16x32xf32>,
    return
  }
  func.func @transform_0(%arg0: i32) -> (i32, i32) {
    %c0_i32 = arith.constant 0 : i32
    %c0_i32_0 = arith.constant 0 : i32
    %c0_i32_1 = arith.constant 0 : i32
    return %c0_i32, %c0_i32_0 : i32, i32
  }
  func.func @transform_1(%arg0: i32) -> (i32, i32) {
    %c0_i32 = arith.constant 0 : i32
    %c0_i32_0 = arith.constant 0 : i32
    %c0_i32_1 = arith.constant 0 : i32
    return %c0_i32, %c0_i32_0 : i32, i32
  }
  func.func @transform_2(%arg0: i32) -> (i32, i32) {
    %c0_i32 = arith.constant 0 : i32
    %c0_i32_0 = arith.constant 0 : i32
    %c0_i32_1 = arith.constant 0 : i32
    return %c0_i32, %c0_i32_0 : i32, i32
  }
  func.func @transform_3(%arg0: i32) -> (i32, i32) {
    %c0_i32 = arith.constant 0 : i32
    %c0_i32_0 = arith.constant 0 : i32
    %c0_i32_1 = arith.constant 0 : i32
    return %c0_i32, %c0_i32_0 : i32, i32
  }
  func.func @transform_4(%arg0: i32) -> (i32, i32) {
    %c0_i32 = arith.constant 0 : i32
    %c0_i32_0 = arith.constant 0 : i32
    %c0_i32_1 = arith.constant 0 : i32
    return %c0_i32, %c0_i32_0 : i32, i32
  }
  func.func @transform_5(%arg0: i32) -> (i32, i32) {
    %c0_i32 = arith.constant 0 : i32
    %c0_i32_0 = arith.constant 0 : i32
    %c0_i32_1 = arith.constant 0 : i32
    return %c0_i32, %c0_i32_0 : i32, i32
  }
  func.func @transform_6(%arg0: i32) -> (i32, i32) {
    %c0_i32 = arith.constant 0 : i32
    %c0_i32_0 = arith.constant 0 : i32
    %c0_i32_1 = arith.constant 0 : i32
    return %c0_i32, %c0_i32_0 : i32, i32
  }
}

</mosaic_0001>

<llo_original>
// kernel: dsrrnn_forward.1
$region0: #{dsrrnn_forward.1}
  #allocation0 [shape = 'u32[]', space=smem, size = 0x4, offset = 0x4, fixed_abs, tag = 'smem constant byte address 0x4 - core index']
  #allocation1 [shape = 'u32[144,128]{1,0:T(1,128)}', space=vmem, size = 0x12000, scoped, tag = 'internal scratch']
  %s0 = inlined_call_operand.vmem [shape: f32[16,32], index: 0, kind: input, shape index: {}]
  %s1 = inlined_call_operand.hbm [shape: f32[16,32], index: 1, kind: input, shape index: {}, may-alias: {1,6}]
  %s2 = inlined_call_operand.vmem [shape: f32[64,32], index: 2, kind: input, shape index: {}]
  %s3 = inlined_call_operand.vmem [shape: f32[2,32], index: 3, kind: input, shape index: {}]
  %s4 = inlined_call_operand.vmem [shape: f32[32,16], index: 4, kind: input, shape index: {}]
  %s5 = inlined_call_operand.hbm [shape: f32[16,16], index: 5, kind: output, shape index: {0}]
  %s6 = inlined_call_operand.hbm [shape: f32[16,32], index: 6, kind: output, shape index: {1}, may-alias: {1,6}]
  %7 = xla_tuple %s5, %s6
  %s8 = sld [smem:[#allocation0]]
  $region42: #{dsrrnn_forward.1} parent=0
    _
  %s10 = ssub.s32 1, %s8
  %s11 = scalar_select 0, %s10, %s8
  $region1: #{dsrrnn_forward.1} parent=0
    #allocation2 [shape = 'u8[8192]{0}', space=vmem, size = 0x2000, scoped, tag = 'input window, operand 1, single buffered']
    #allocation3 [shape = 's32[1]{0}', space=sflag, size = 0x4, scoped, tag = 'scoped memory for dsrrnn_forward.1']
    #allocation4 [shape = 's32[1]{0}', space=sflag, size = 0x4, scoped, tag = 'scoped memory for dsrrnn_forward.1']
    #allocation5 [shape = 'u8[8192]{0}', space=vmem, size = 0x2000, scoped, tag = 'output window, operand 0, single buffered']
    #allocation6 [shape = 'u8[8192]{0}', space=vmem, size = 0x2000, scoped, tag = 'output window, operand 1, single buffered']
    #allocation7 [shape = 's32[1]{0}', space=sflag, size = 0x4, scoped, tag = 'scoped memory for dsrrnn_forward.1']
    %12 = vsyncpa [#allocation3], 0
    %13 = vsyncpa [#allocation4], 0
    %14 = vsyncpa [#allocation7], 0
    // Predicated region
    $region2: #{dsrrnn_forward.1} parent=1 // pred_check
      _
    $region3: #{dsrrnn_forward.1} parent=1 // pred_check_branch
      %16 = sbr.rel (0) target = $region5
    $region4: #{dsrrnn_forward.1} parent=1 // pred_region
      _
    $region5: #{dsrrnn_forward.1} parent=1 // pred_fallthru
      _
    // Predicated region
    $region6: #{dsrrnn_forward.1} parent=1 // pred_check
      _
    $region7: #{dsrrnn_forward.1} parent=1 // pred_check_branch
      %18 = sbr.rel (0) target = $region9
    $region8: #{dsrrnn_forward.1} parent=1 // pred_region
      %s20 = ssub.s32 256, 256
      %21 = vsyncadd [#allocation3], %s20
      %s22 = sshll.u32 [#allocation2], 4
      %s23 = int_to_ptr.vmem [resolvable:$true] %s22
      %28 = dma.hbm_to_vmem [thread:$0]  %s1, 256, %s23, [#allocation3], 128, 128, 8
    $region9: #{dsrrnn_forward.1} parent=1 // pred_fallthru
      _
    // Predicated region
    $region10: #{dsrrnn_forward.1} parent=1 // pred_check
      _
    $region11: #{dsrrnn_forward.1} parent=1 // pred_check_branch
      %30 = sbr.rel (0) target = $region13
    $region12: #{dsrrnn_forward.1} parent=1 // pred_region
      _
    $region13: #{dsrrnn_forward.1} parent=1 // pred_fallthru
      _
    // Predicated region
    $region14: #{dsrrnn_forward.1} parent=1 // pred_check
      _
    $region15: #{dsrrnn_forward.1} parent=1 // pred_check_branch
      %32 = sbr.rel (0) target = $region17
    $region16: #{dsrrnn_forward.1} parent=1 // pred_region
      _
    $region17: #{dsrrnn_forward.1} parent=1 // pred_fallthru
      _
    // Predicated region
    $region18: #{dsrrnn_forward.1} parent=1 // pred_check
      _
    $region19: #{dsrrnn_forward.1} parent=1 // pred_check_branch
      %34 = sbr.rel (0) target = $region21
    $region20: #{dsrrnn_forward.1} parent=1 // pred_region
      _
    $region21: #{dsrrnn_forward.1} parent=1 // pred_fallthru
      _
    // Predicated region
    $region22: #{dsrrnn_forward.1} parent=1 // pred_check
      _
    $region23: #{dsrrnn_forward.1} parent=1 // pred_check_branch
      %36 = sbr.rel (0) target = $region25
    $region24: #{dsrrnn_forward.1} parent=1 // pred_region
      %37 = dma.done [#allocation3], 256
    $region25: #{dsrrnn_forward.1} parent=1 // pred_fallthru
      _
    %v38 = vld [vmem:[%s3] sm:$0x3]
    %v39 = vld [vmem:[%s0] sm:$0xff]
    %v40 = vld [vmem:[%s0 + $0x8] sm:$0xff]
    %v41 = vld [vmem:[%s2] sm:$0xff]
    %v42 = vld [vmem:[%s2 + $0x8] sm:$0xff]
    %v43 = vld [vmem:[%s2 + $0x10] sm:$0xff]
    %v44 = vld [vmem:[%s2 + $0x18] sm:$0xff]
    %v45 = vld [vmem:[#allocation2] sm:$0xff]
    %v46 = vld [vmem:[#allocation2 + $0x8] sm:$0xff]
    %v47 = vld [vmem:[%s2 + $0x20] sm:$0xff]
    %v48 = vld [vmem:[%s2 + $0x28] sm:$0xff]
    %v49 = vld [vmem:[%s2 + $0x30] sm:$0xff]
    %v50 = vld [vmem:[%s2 + $0x38] sm:$0xff]
    %vm51 = vcmask 261120
    %v53 = vsel %vm51, %v45, 0
    %v56 = vsel %vm51, %v46, 0
    %58 = vmatprep.subr.mxu0 0.0
    %59 = vmatpush1.msra.mxu0 %v47
    %60 = vmatprep.subr.mxu0 0.0
    %61 = vmatpush1.msra.mxu0 %v48
    %62 = vmatprep.subr.mxu0 0.0
    %63 = vmatpush1.msra.mxu0 %v49
    %64 = vmatprep.subr.mxu0 0.0
    %65 = vmatpush1.msra.mxu0 %v50
    %66 = vmatprep.subr.mxu0 0.0
    %67 = vmatpush1.msra.mxu0 0.0
    %68 = vmatprep.subr.mxu0 0.0
    %69 = vmatpush1.msra.mxu0 0.0
    %70 = vmatprep.subr.mxu0 0.0
    %71 = vmatpush1.msra.mxu0 0.0
    %72 = vmatprep.subr.mxu0 0.0
    %73 = vmatpush1.msra.mxu0 0.0
    %74 = vmatprep.subr.mxu0 0.0
    %75 = vmatpush1.msra.mxu0 0.0
    %76 = vmatprep.subr.mxu0 0.0
    %77 = vmatpush1.msra.mxu0 0.0
    %78 = vmatprep.subr.mxu0 0.0
    %79 = vmatpush1.msra.mxu0 0.0
    %80 = vmatprep.subr.mxu0 0.0
    %81 = vmatpush1.msra.mxu0 0.0
    %82 = vmatprep.subr.mxu0 0.0
    %83 = vmatpush1.msra.mxu0 0.0
    %84 = vmatprep.subr.mxu0 0.0
    %85 = vmatpush1.msra.mxu0 0.0
    %86 = vmatprep.subr.mxu0 0.0
    %87 = vmatpush1.msra.mxu0 0.0
    %88 = vmatprep.subr.mxu0 0.0
    %89 = vmatpush1.msra.mxu0 0.0
    %90 = vmatprep.subr.mxu0 0.0
    %91 = vmatpush1.msra.mxu0 0.0
    %92 = vmatprep.subr.mxu0 0.0
    %93 = vmatpush1.msra.mxu0 0.0
    %94 = vmatprep.subr.mxu0 0.0
    %95 = vmatpush1.msra.mxu0 0.0
    %96 = vmatprep.subr.mxu0 0.0
    %97 = vmatpush1.msra.mxu0 0.0
    %98 = vmatprep.subr.mxu0 0.0
    %99 = vmatpush1.msra.mxu0 0.0
    %100 = vmatprep.subr.mxu0 0.0
    %101 = vmatpush1.msra.mxu0 0.0
    %102 = vmatprep.subr.mxu0 0.0
    %103 = vmatpush1.msra.mxu0 0.0
    %104 = vmatprep.subr.mxu0 0.0
    %105 = vmatpush1.msra.mxu0 0.0
    %106 = vmatprep.subr.mxu0 0.0
    %107 = vmatpush1.msra.mxu0 0.0
    %108 = vmatprep.subr.mxu0 0.0
    %109 = vmatpush1.msra.mxu0 0.0
    %110 = vmatprep.subr.mxu0 0.0
    %111 = vmatpush1.msra.mxu0 0.0
    %112 = vmatprep.subr.mxu0 0.0
    %113 = vmatpush1.msra.mxu0 0.0
    %114 = vmatprep.subr.mxu0 0.0
    %115 = vmatpush1.msra.mxu0 0.0
    %116 = vmatprep.subr.mxu0 0.0
    %117 = vmatpush1.msra.mxu0 0.0
    %118 = vmatprep.subr.mxu0 0.0
    %119 = vmatpush1.msra.mxu0 0.0
    %120 = vmatprep.subr.mxu0 0.0
    %121 = vmatpush1.msra.mxu0 0.0
    %122 = vmatprep.mubr.f32.mxu0 0.0
    %123 = vmatmul.mubr.f32.gmra.mrb[0].mxu0 %v53
    %v124 = vpop.f32.mrb[0].mxu0
    %v125 = vadd.f32 0.0, %v124
    %v126 = vpop.f32.mrb[0].mxu0
    %127 = vmatprep.mubr.f32.mxu0 0.0
    %128 = vmatmul.mubr.f32.gmra.mrb[0].mxu0 %v56
    %v129 = vpop.f32.mrb[0].mxu0
    %v130 = vadd.f32 0.0, %v129
    %v131 = vpop.f32.mrb[0].mxu0
    %132 = vdwg.mxu0
    %v134 = vsel %vm51, %v39, 0
    %v137 = vsel %vm51, %v40, 0
    %139 = vmatprep.subr.mxu0 0.0
    %140 = vmatpush1.msra.mxu0 %v41
    %141 = vmatprep.subr.mxu0 0.0
    %142 = vmatpush1.msra.mxu0 %v42
    %143 = vmatprep.subr.mxu0 0.0
    %144 = vmatpush1.msra.mxu0 %v43
    %145 = vmatprep.subr.mxu0 0.0
    %146 = vmatpush1.msra.mxu0 %v44
    %147 = vmatprep.subr.mxu0 0.0
    %148 = vmatpush1.msra.mxu0 0.0
    %149 = vmatprep.subr.mxu0 0.0
    %150 = vmatpush1.msra.mxu0 0.0
    %151 = vmatprep.subr.mxu0 0.0
    %152 = vmatpush1.msra.mxu0 0.0
    %153 = vmatprep.subr.mxu0 0.0
    %154 = vmatpush1.msra.mxu0 0.0
    %155 = vmatprep.subr.mxu0 0.0
    %156 = vmatpush1.msra.mxu0 0.0
    %157 = vmatprep.subr.mxu0 0.0
    %158 = vmatpush1.msra.mxu0 0.0
    %159 = vmatprep.subr.mxu0 0.0
    %160 = vmatpush1.msra.mxu0 0.0
    %161 = vmatprep.subr.mxu0 0.0
    %162 = vmatpush1.msra.mxu0 0.0
    %163 = vmatprep.subr.mxu0 0.0
    %164 = vmatpush1.msra.mxu0 0.0
    %165 = vmatprep.subr.mxu0 0.0
    %166 = vmatpush1.msra.mxu0 0.0
    %167 = vmatprep.subr.mxu0 0.0
    %168 = vmatpush1.msra.mxu0 0.0
    %169 = vmatprep.subr.mxu0 0.0
    %170 = vmatpush1.msra.mxu0 0.0
    %171 = vmatprep.subr.mxu0 0.0
    %172 = vmatpush1.msra.mxu0 0.0
    %173 = vmatprep.subr.mxu0 0.0
    %174 = vmatpush1.msra.mxu0 0.0
    %175 = vmatprep.subr.mxu0 0.0
    %176 = vmatpush1.msra.mxu0 0.0
    %177 = vmatprep.subr.mxu0 0.0
    %178 = vmatpush1.msra.mxu0 0.0
    %179 = vmatprep.subr.mxu0 0.0
    %180 = vmatpush1.msra.mxu0 0.0
    %181 = vmatprep.subr.mxu0 0.0
    %182 = vmatpush1.msra.mxu0 0.0
    %183 = vmatprep.subr.mxu0 0.0
    %184 = vmatpush1.msra.mxu0 0.0
    %185 = vmatprep.subr.mxu0 0.0
    %186 = vmatpush1.msra.mxu0 0.0
    %187 = vmatprep.subr.mxu0 0.0
    %188 = vmatpush1.msra.mxu0 0.0
    %189 = vmatprep.subr.mxu0 0.0
    %190 = vmatpush1.msra.mxu0 0.0
    %191 = vmatprep.subr.mxu0 0.0
    %192 = vmatpush1.msra.mxu0 0.0
    %193 = vmatprep.subr.mxu0 0.0
    %194 = vmatpush1.msra.mxu0 0.0
    %195 = vmatprep.subr.mxu0 0.0
    %196 = vmatpush1.msra.mxu0 0.0
    %197 = vmatprep.subr.mxu0 0.0
    %198 = vmatpush1.msra.mxu0 0.0
    %199 = vmatprep.subr.mxu0 0.0
    %200 = vmatpush1.msra.mxu0 0.0
    %201 = vmatprep.subr.mxu0 0.0
    %202 = vmatpush1.msra.mxu0 0.0
    %203 = vmatprep.mubr.f32.mxu0 0.0
    %204 = vmatmul.mubr.f32.gmra.mrb[0].mxu0 %v134
    %v205 = vpop.f32.mrb[0].mxu0
    %v206 = vadd.f32 %v125, %v205
    %v207 = vpop.f32.mrb[0].mxu0
    %208 = vmatprep.mubr.f32.mxu0 0.0
    %209 = vmatmul.mubr.f32.gmra.mrb[0].mxu0 %v137
    %v210 = vpop.f32.mrb[0].mxu0
    %v211 = vadd.f32 %v130, %v210
    %v212 = vpop.f32.mrb[0].mxu0
    %213 = vdwg.mxu0
    %v214 = vlaneseq
    %v215 = vshrl.u32 %v214, 7
    %v216 = vsub.s32 0, %v215
    %v217 = vrot.slane %v38, %v216
    %v218 = vadd.f32 %v206, %v217
    %v219 = vadd.f32 %v211, %v217
    %v220 = vtanh.pop %v218
    %v221 = vtanh.pop %v219
    %v222 = vld [vmem:[%s4] sm:$0xff]
    %v223 = vld [vmem:[%s4 + $0x8] sm:$0xff]
    %v224 = vld [vmem:[%s4 + $0x10] sm:$0xff]
    %v225 = vld [vmem:[%s4 + $0x18] sm:$0xff]
    %v226 = vlaneseq
    %v227 = vshrl.u32 %v226, 7
    %v228 = vsub.s32 1, %v227
    %v229 = vrot.slane %v38, %v228
    %v231 = vsel %vm51, %v220, 0
    %v234 = vsel %vm51, %v221, 0
    %236 = vmatprep.subr.mxu0 0.0
    %237 = vmatpush1.msra.mxu0 %v222
    %238 = vmatprep.subr.mxu0 0.0
    %239 = vmatpush1.msra.mxu0 %v223
    %240 = vmatprep.subr.mxu0 0.0
    %241 = vmatpush1.msra.mxu0 %v224
    %242 = vmatprep.subr.mxu0 0.0
    %243 = vmatpush1.msra.mxu0 %v225
    %244 = vmatprep.subr.mxu0 0.0
    %245 = vmatpush1.msra.mxu0 0.0
    %246 = vmatprep.subr.mxu0 0.0
    %247 = vmatpush1.msra.mxu0 0.0
    %248 = vmatprep.subr.mxu0 0.0
    %249 = vmatpush1.msra.mxu0 0.0
    %250 = vmatprep.subr.mxu0 0.0
    %251 = vmatpush1.msra.mxu0 0.0
    %252 = vmatprep.subr.mxu0 0.0
    %253 = vmatpush1.msra.mxu0 0.0
    %254 = vmatprep.subr.mxu0 0.0
    %255 = vmatpush1.msra.mxu0 0.0
    %256 = vmatprep.subr.mxu0 0.0
    %257 = vmatpush1.msra.mxu0 0.0
    %258 = vmatprep.subr.mxu0 0.0
    %259 = vmatpush1.msra.mxu0 0.0
    %260 = vmatprep.subr.mxu0 0.0
    %261 = vmatpush1.msra.mxu0 0.0
    %262 = vmatprep.subr.mxu0 0.0
    %263 = vmatpush1.msra.mxu0 0.0
    %264 = vmatprep.subr.mxu0 0.0
    %265 = vmatpush1.msra.mxu0 0.0
    %266 = vmatprep.subr.mxu0 0.0
    %267 = vmatpush1.msra.mxu0 0.0
    %268 = vmatprep.subr.mxu0 0.0
    %269 = vmatpush1.msra.mxu0 0.0
    %270 = vmatprep.subr.mxu0 0.0
    %271 = vmatpush1.msra.mxu0 0.0
    %272 = vmatprep.subr.mxu0 0.0
    %273 = vmatpush1.msra.mxu0 0.0
    %274 = vmatprep.subr.mxu0 0.0
    %275 = vmatpush1.msra.mxu0 0.0
    %276 = vmatprep.subr.mxu0 0.0
    %277 = vmatpush1.msra.mxu0 0.0
    %278 = vmatprep.subr.mxu0 0.0
    %279 = vmatpush1.msra.mxu0 0.0
    %280 = vmatprep.subr.mxu0 0.0
    %281 = vmatpush1.msra.mxu0 0.0
    %282 = vmatprep.subr.mxu0 0.0
    %283 = vmatpush1.msra.mxu0 0.0
    %284 = vmatprep.subr.mxu0 0.0
    %285 = vmatpush1.msra.mxu0 0.0
    %286 = vmatprep.subr.mxu0 0.0
    %287 = vmatpush1.msra.mxu0 0.0
    %288 = vmatprep.subr.mxu0 0.0
    %289 = vmatpush1.msra.mxu0 0.0
    %290 = vmatprep.subr.mxu0 0.0
    %291 = vmatpush1.msra.mxu0 0.0
    %292 = vmatprep.subr.mxu0 0.0
    %293 = vmatpush1.msra.mxu0 0.0
    %294 = vmatprep.subr.mxu0 0.0
    %295 = vmatpush1.msra.mxu0 0.0
    %296 = vmatprep.subr.mxu0 0.0
    %297 = vmatpush1.msra.mxu0 0.0
    %298 = vmatprep.subr.mxu0 0.0
    %299 = vmatpush1.msra.mxu0 0.0
    %300 = vmatprep.mubr.f32.mxu0 0.0
    %301 = vmatmul.mubr.f32.gmra.mrb[0].mxu0 %v231
    %v302 = vpop.f32.mrb[0].mxu0
    %v303 = vadd.f32 %v229, %v302
    %v304 = vpop.f32.mrb[0].mxu0
    %305 = vmatprep.mubr.f32.mxu0 0.0
    %306 = vmatmul.mubr.f32.gmra.mrb[0].mxu0 %v234
    %v307 = vpop.f32.mrb[0].mxu0
    %v308 = vadd.f32 %v229, %v307
    %v309 = vpop.f32.mrb[0].mxu0
    %310 = vdwg.mxu0
    %vm311 = vcmask 130048
    %v312 = vsel %vm311, %v303, -inf
    %313 = vmax.xlane.f32.xlu0 %v312
    %v314 = vpop.xlane.xlu0 %313
    %v315 = vsel %vm311, %v308, -inf
    %316 = vmax.xlane.f32.xlu0 %v315
    %v317 = vpop.xlane.xlu0 %316
    %v318 = vsub.f32 %v303, %v314
    %v319 = vsub.f32 %v308, %v317
    %v320 = vmul.f32 %v318, 1.442695
    %v321 = vpow.pop %v320
    %v322 = vmul.f32 %v319, 1.442695
    %v323 = vpow.pop %v322
    %v324 = vsel %vm311, %v321, 0.0
    %325 = vadd.xlane.f32.xlu0 %v324
    %v326 = vpop.xlane.xlu0 %325
    %v327 = vsel %vm311, %v323, 0.0
    %328 = vadd.xlane.f32.xlu0 %v327
    %v329 = vpop.xlane.xlu0 %328
    %v330 = vrcp.pop %v326
    %v331 = vrcp.pop %v329
    %v332 = vmul.f32 %v321, %v330
    %v333 = vmul.f32 %v323, %v331
    %334 = vst.msk [vmem:[#allocation5] sm:$0xff] %vm311, %v332
    %335 = vst.msk [vmem:[#allocation5 + $0x8] sm:$0xff] %vm311, %v333
    %336 = vst.msk [vmem:[#allocation6] sm:$0xff] %vm51, %v220
    %337 = vst.msk [vmem:[#allocation6 + $0x8] sm:$0xff] %vm51, %v221
    // Predicated region
    $region26: #{dsrrnn_forward.1} parent=1 // pred_check
      _
    $region27: #{dsrrnn_forward.1} parent=1 // pred_check_branch
      %339 = sbr.rel (0) target = $region29
    $region28: #{dsrrnn_forward.1} parent=1 // pred_region
      %s341 = ssub.s32 256, 256
      %342 = vsyncadd [#allocation4], %s341
      %s343 = sshll.u32 [#allocation5], 4
      %s344 = int_to_ptr.vmem [resolvable:$true] %s343
      %349 = dma.vmem_to_hbm [thread:$0]  %s344, 256, %s5, [#allocation4], 128, 128, 8
    $region29: #{dsrrnn_forward.1} parent=1 // pred_fallthru
      _
    // Predicated region
    $region30: #{dsrrnn_forward.1} parent=1 // pred_check
      _
    $region31: #{dsrrnn_forward.1} parent=1 // pred_check_branch
      %351 = sbr.rel (0) target = $region33
    $region32: #{dsrrnn_forward.1} parent=1 // pred_region
      %s353 = ssub.s32 256, 256
      %354 = vsyncadd [#allocation7], %s353
      %s355 = sshll.u32 [#allocation6], 4
      %s356 = int_to_ptr.vmem [resolvable:$true] %s355
      %361 = dma.vmem_to_hbm [thread:$0]  %s356, 256, %s6, [#allocation7], 128, 128, 8
    $region33: #{dsrrnn_forward.1} parent=1 // pred_fallthru
      _
    // Predicated region
    $region34: #{dsrrnn_forward.1} parent=1 // pred_check
      _
    $region35: #{dsrrnn_forward.1} parent=1 // pred_check_branch
      %363 = sbr.rel (0) target = $region37
    $region36: #{dsrrnn_forward.1} parent=1 // pred_region
      %364 = dma.done [#allocation4], 256
    $region37: #{dsrrnn_forward.1} parent=1 // pred_fallthru
      _
    // Predicated region
    $region38: #{dsrrnn_forward.1} parent=1 // pred_check
      _
    $region39: #{dsrrnn_forward.1} parent=1 // pred_check_branch
      %366 = sbr.rel (0) target = $region41
    $region40: #{dsrrnn_forward.1} parent=1 // pred_region
      %367 = dma.done [#allocation7], 256
    $region41: #{dsrrnn_forward.1} parent=1 // pred_fallthru
      _
    %368 = vsyncpa [#allocation3], 1
    %369 = vsyncpa [#allocation4], 1
    %370 = vsyncpa [#allocation7], 1

</llo_original>
